<compile_context>
chip_gen: v5e
topology: v5e:2x2
jax: 0.10.0
libtpu: 0.0.40
codegen_flags: <defaults>
</compile_context>

<pallas_src>
import functools

import jax
import jax.numpy as jnp
from jax import lax
from jax.experimental import pallas as pl
from jax.experimental.pallas import tpu as pltpu


_MASK_VALUE = -1e30               # finite -> exp() underflows to 0, never NaN
_VMEM_LIMIT_BYTES = 32 * 1024 * 1024  # raises v5e's 16 MiB default; < v7x 64 MiB phys


def _qkv_proj_kernel(x_ref, w_ref, q_ref, k_ref, v_ref, *, d_tot):
    # x_ref: (1, tp, d_in); w_ref: (d_in, 3*d_tot) resident fused [Wq|Wk|Wv]
    # q/k/v_ref: (1, tp, d_tot)
    y = jnp.dot(x_ref[0], w_ref[...], preferred_element_type=jnp.float32)
    q_ref[0] = y[:, :d_tot].astype(q_ref.dtype)
    k_ref[0] = y[:, d_tot:2 * d_tot].astype(k_ref.dtype)
    v_ref[0] = y[:, 2 * d_tot:].astype(v_ref.dtype)


def _flash_kernel(q_ref, k_ref, v_ref, o_ref, qh_sc, m_sc, l_sc, acc_sc, *,
                  num_heads, d_out, tq, tk):
    # q_ref : (1, tq, H*d_out) projected queries (scale already folded in)
    # k/v   : (1, tk, H*d_out) projected keys / values
    # o_ref : (1, tq, H*d_out)
    # qh_sc : (H, tq, d_out)   head-major q, computed once per (b, qi)
    # m/l_sc: (H, tq, 1) f32   running max / running sum
    # acc_sc: (H, tq, d_out) f32 running context accumulator
    qi = pl.program_id(1)
    ki = pl.program_id(2)
    n_kv = pl.num_programs(2)
    q_start = qi * tq
    k_start = ki * tk

    @pl.when(ki == 0)
    def _init():
        # q depends only on (b, qi): relayout it to head-major once and reuse
        # for every kv step.
        q = q_ref[0]                                              # (tq, H*d_out)
        qh_sc[...] = jnp.transpose(q.reshape(tq, num_heads, d_out), (1, 0, 2))
        m_sc[...] = jnp.full(m_sc.shape, -jnp.inf, m_sc.dtype)
        l_sc[...] = jnp.zeros(l_sc.shape, l_sc.dtype)
        acc_sc[...] = jnp.zeros(acc_sc.shape, acc_sc.dtype)

    def _accumulate(apply_mask):
        k = k_ref[0]                                              # (tk, H*d_out)
        v = v_ref[0]
        op_dtype = k.dtype
        k_h = jnp.transpose(k.reshape(tk, num_heads, d_out), (1, 0, 2))  # (H,tk,d)
        v_h = jnp.transpose(v.reshape(tk, num_heads, d_out), (1, 0, 2))

        # All heads in one batched MXU op; f32 accumulation.
        s = jnp.einsum('hqd,hkd->hqk', qh_sc[...], k_h,
                       preferred_element_type=jnp.float32)        # (H, tq, tk)
        if apply_mask:  # only diagonal-crossing tiles pay for the mask select
            row = q_start + lax.broadcasted_iota(jnp.int32, (tq, tk), 0)
            col = k_start + lax.broadcasted_iota(jnp.int32, (tq, tk), 1)
            s = jnp.where((col > row)[None, :, :], _MASK_VALUE, s)

        m_prev = m_sc[...]                                        # (H, tq, 1)
        m_new = jnp.maximum(m_prev, jnp.max(s, axis=-1, keepdims=True))
        alpha = jnp.exp(m_prev - m_new)
        p = jnp.exp(s - m_new)                                    # (H, tq, tk)
        l_sc[...] = alpha * l_sc[...] + jnp.sum(p, axis=-1, keepdims=True)
        acc_sc[...] = alpha * acc_sc[...] + jnp.einsum(
            'hqk,hkd->hqd', p.astype(op_dtype), v_h,
            preferred_element_type=jnp.float32)                   # (H, tq, d_out)
        m_sc[...] = m_new

    # Tile classification against the causal diagonal.
    needed = k_start <= q_start + (tq - 1)    # tile has >= 1 unmasked entry
    crosses = k_start + (tk - 1) > q_start    # tile has >= 1 masked entry

    @pl.when(jnp.logical_and(needed, crosses))
    def _diagonal_tile():
        _accumulate(True)

    @pl.when(jnp.logical_not(crosses))        # implies `needed`
    def _interior_tile():
        _accumulate(False)

    @pl.when(ki == n_kv - 1)
    def _finalize():
        l = l_sc[...]
        inv = pl.reciprocal(l, approx=True)   # EUP slot
        inv = inv * (2.0 - l * inv)           # one Newton step -> ~f32-exact
        out = acc_sc[...] * inv               # (H, tq, d_out)
        out = jnp.transpose(out, (1, 0, 2)).reshape(tq, num_heads * d_out)
        o_ref[0] = out.astype(o_ref.dtype)


def _pick_tile(t, max_tile=256):
    # 256 fills the v6e/v7x 256x256 MXU; on v5e (4x128^2 MXU) pass max_tile=128.
    # All candidates are multiples of 8; fallback = full extent (single tile).
    for c in (256, 128, 64, 32, 16, 8):
        if c <= max_tile and t >= c and t % c == 0:
            return c
    return t


def multi_head_attention_wrapper(x, wq, wk, wv, *, max_seq_tile=256):
    """x: (B, T, d_in); wq/wk/wv: (H, d_in, d_out) per-head weights.

    Returns (B, T, H*d_out) == torch.cat([head(x) for head in heads], dim=-1),
    with causal masking and eval-mode (identity) dropout.
    """
    B, T, d_in = x.shape
    H, _, d_out = wq.shape
    d_tot = H * d_out

    # Fuse all heads into lane-dense (d_in, H*d_out) matrices (column block
    # h*d_out:(h+1)*d_out is head h), fold 1/sqrt(d_out) into Wq, and fuse
    # Q/K/V into one (d_in, 3*H*d_out) matrix -> single matmul in pass 1.
    wq_f = jnp.transpose(wq, (1, 0, 2)).reshape(d_in, d_tot) * (d_out ** -0.5)
    wk_f = jnp.transpose(wk, (1, 0, 2)).reshape(d_in, d_tot)
    wv_f = jnp.transpose(wv, (1, 0, 2)).reshape(d_in, d_tot)
    w_qkv = jnp.concatenate([wq_f, wk_f, wv_f], axis=-1).astype(x.dtype)

    # ---- Pass 1: fused QKV projection (each token projected exactly once). ----
    tp = _pick_tile(T, max_seq_tile)
    n_p = T // tp
    proj_out = jax.ShapeDtypeStruct((B, T, d_tot), x.dtype)
    q_p, k_p, v_p = pl.pallas_call(
        functools.partial(_qkv_proj_kernel, d_tot=d_tot),
        out_shape=(proj_out, proj_out, proj_out),
        grid_spec=pltpu.PrefetchScalarGridSpec(
            num_scalar_prefetch=0,
            grid=(B, n_p),
            in_specs=[
                pl.BlockSpec((1, tp, d_in), lambda b, ti: (b, ti, 0)),
                # Constant index_map -> weights DMA'd once, kept VMEM-resident.
                # TODO(synk): single-buffer (pl.Buffered(1)) or add a d_in grid
                # axis for large d_model against v7x's 64 MiB VMEM.
                pl.BlockSpec((d_in, 3 * d_tot), lambda b, ti: (0, 0)),
            ],
            out_specs=[
                pl.BlockSpec((1, tp, d_tot), lambda b, ti: (b, ti, 0)),
                pl.BlockSpec((1, tp, d_tot), lambda b, ti: (b, ti, 0)),
                pl.BlockSpec((1, tp, d_tot), lambda b, ti: (b, ti, 0)),
            ],
        ),
        compiler_params=pltpu.CompilerParams(
            dimension_semantics=("parallel", "parallel"),
            vmem_limit_bytes=_VMEM_LIMIT_BYTES),
    )(x, w_qkv)

    # ---- Pass 2: causal flash attention over the projected q/k/v. ----
    tq = _pick_tile(T, max_seq_tile)
    tk = _pick_tile(T, max_seq_tile)
    n_q = T // tq
    n_kv = T // tk

    def q_idx(b, qi, ki):
        return (b, qi, 0)

    def kv_idx(b, qi, ki):
        # Clamp the kv block index at the last tile touching the causal
        # diagonal for this q tile: causally skipped steps reuse the previous
        # block index, so Pallas elides their HBM->VMEM DMA.
        return (b, jnp.minimum(ki, (qi * tq + tq - 1) // tk), 0)

    kernel = functools.partial(_flash_kernel,
                               num_heads=H, d_out=d_out, tq=tq, tk=tk)
    return pl.pallas_call(
        kernel,
        out_shape=jax.ShapeDtypeStruct((B, T, d_tot), x.dtype),
        grid_spec=pltpu.PrefetchScalarGridSpec(
            num_scalar_prefetch=0,
            grid=(B, n_q, n_kv),                       # kv (reduction) axis last
            in_specs=[
                pl.BlockSpec((1, tq, d_tot), q_idx),   # projected q
                pl.BlockSpec((1, tk, d_tot), kv_idx),  # projected k
                pl.BlockSpec((1, tk, d_tot), kv_idx),  # projected v
            ],
            out_specs=pl.BlockSpec((1, tq, d_tot), q_idx),
            scratch_shapes=[
                pltpu.VMEM((H, tq, d_out), x.dtype),      # head-major q (hoisted)
                pltpu.VMEM((H, tq, 1), jnp.float32),      # running max m
                pltpu.VMEM((H, tq, 1), jnp.float32),      # running sum l
                pltpu.VMEM((H, tq, d_out), jnp.float32),  # running context acc
            ],
        ),
        compiler_params=pltpu.CompilerParams(
            # Keep B * n_q >= 2 so both v7x TensorCores get work.
            dimension_semantics=("parallel", "parallel", "arbitrary"),
            vmem_limit_bytes=_VMEM_LIMIT_BYTES),
    )(q_p, k_p, v_p)


def _reference(x, wq, wk, wv):
    B, T, d_in = x.shape
    H, _, d_out = wq.shape
    outs = []
    mask = jnp.triu(jnp.ones((T, T), bool), k=1)
    for h in range(H):
        q = x @ wq[h]
        k = x @ wk[h]
        v = x @ wv[h]
        s = q @ jnp.swapaxes(k, 1, 2)
        s = jnp.where(mask, -jnp.inf, s) / (d_out ** 0.5)
        w = jax.nn.softmax(s, axis=-1)
        outs.append(w @ v)
    return jnp.concatenate(outs, axis=-1)


if __name__ == "__main__":
    H, d_out = 12, 1          # module spec: d_out=1, num_heads=12
    key = jax.random.PRNGKey(0)

    # Case 1: small shapes, single-tile path.
    B, T, d_in = 2, 8, 4
    kx, kq, kk, kv, key = jax.random.split(key, 5)
    x = jax.random.normal(kx, (B, T, d_in), dtype=jnp.float32)
    wq = jax.random.normal(kq, (H, d_in, d_out), dtype=jnp.float32) * 0.1
    wk = jax.random.normal(kk, (H, d_in, d_out), dtype=jnp.float32) * 0.1
    wv = jax.random.normal(kv, (H, d_in, d_out), dtype=jnp.float32) * 0.1

    out = jax.block_until_ready(multi_head_attention_wrapper(x, wq, wk, wv))
    ref = _reference(x, wq, wk, wv)
    assert out.shape == (B, T, H * d_out), out.shape
    assert jnp.allclose(out, ref, atol=1e-5, rtol=1e-4), "case 1 mismatch"

    # Case 2: multi-tile flash path (forced 16-token tiles) exercising the
    # causal tile skip, clamped kv DMA, and diagonal/interior mask branches.
    B2, T2, d_in2 = 2, 64, 8
    kx2, kq2, kk2, kv2, key = jax.random.split(key, 5)
    x2 = jax.random.normal(kx2, (B2, T2, d_in2), dtype=jnp.float32)
    wq2 = jax.random.normal(kq2, (H, d_in2, d_out), dtype=jnp.float32) * 0.1
    wk2 = jax.random.normal(kk2, (H, d_in2, d_out), dtype=jnp.float32) * 0.1
    wv2 = jax.random.normal(kv2, (H, d_in2, d_out), dtype=jnp.float32) * 0.1

    out2 = jax.block_until_ready(
        multi_head_attention_wrapper(x2, wq2, wk2, wv2, max_seq_tile=16))
    ref2 = _reference(x2, wq2, wk2, wv2)
    assert out2.shape == (B2, T2, H * d_out), out2.shape
    assert jnp.allclose(out2, ref2, atol=1e-5, rtol=1e-4), "case 2 mismatch"

    print("KERNEL_OK")
</pallas_src>

<mosaic_0001>
module attributes {stable_mosaic.version = 11 : i64} {
  func.func @_qkv_proj_kernel(%arg0: i32, %arg1: i32, %arg2: memref<1x8x4xf32, #tpu.memory_space<vmem>>, %arg3: memref<4x36xf32, #tpu.memory_space<vmem>>, %arg4: memref<1x8x12xf32, #tpu.memory_space<vmem>>, %arg5: memref<1x8x12xf32, #tpu.memory_space<vmem>>, %arg6: memref<1x8x12xf32, #tpu.memory_space<vmem>>) attributes {dimension_semantics = [#tpu.dimension_semantics<parallel>, #tpu.dimension_semantics<parallel>], iteration_bounds = array<i64: 2, 1>, scalar_prefetch = 0 : i64, scratch_operands = 0 : i64, tpu.core_type = #tpu.core_type<tc>, window_params = [{transform_indices = @transform_0, window_bounds = array<i64: 1, 8, 4>}, {pipeline_mode = #tpu.pipeline_mode<synchronous>, transform_indices = @transform_1, window_bounds = array<i64: 4, 36>}, {transform_indices = @transform_2, window_bounds = array<i64: 1, 8, 12>}, {transform_indices = @transform_3, window_bounds = array<i64: 1, 8, 12>}, {transform_indices = @transform_4, window_bounds = array<i64: 1, 8, 12>}]} {
    %c0 = arith.constant 0 : index
    %c0_0 = arith.constant 0 : index
    %c0_1 = arith.constant 0 : index
    %0 = vector.load %arg2[%c0, %c0_0, %c0_1] : memref<1x8x4xf32, #tpu.memory_space<vmem>>, vector<1x8x4xf32>
    %1 = vector.shape_cast %0 : vector<1x8x4xf32> to vector<8x4xf32>
    %c0_2 = arith.constant 0 : index
    %c0_3 = arith.constant 0 : index
    %2 = vector.load %arg3[%c0_2, %c0_3] : memref<4x36xf32, #tpu.memory_space<vmem>>, vector<4x36xf32>
    %cst = arith.constant dense<0.000000e+00> : vector<8x36xf32>
    %3 = tpu.matmul %1, %2, %cst {dimension_numbers = #tpu.dot_dimension_numbers<[1], [0], [0], [1], [0, 0, 1, 1], [], []>} : vector<8x4xf32>, vector<4x36xf32>, vector<8x36xf32> -> vector<8x36xf32>
    %4 = vector.extract_strided_slice %3 {offsets = [0, 0], sizes = [8, 12], strides = [1, 1]} : vector<8x36xf32> to vector<8x12xf32>
    %c0_4 = arith.constant 0 : index
    %c0_5 = arith.constant 0 : index
    %c0_6 = arith.constant 0 : index
    %5 = vector.load %arg4[%c0_4, %c0_5, %c0_6] : memref<1x8x12xf32, #tpu.memory_space<vmem>>, vector<1x8x12xf32>
    %6 = vector.shape_cast %5 : vector<1x8x12xf32> to vector<8x12xf32>
    %7 = vector.shape_cast %4 : vector<8x12xf32> to vector<1x8x12xf32>
    tpu.vector_store %arg4[%c0_4, %c0_5, %c0_6], %7 {strides = array<i32>} : memref<1x8x12xf32, #tpu.memory_space<vmem>>, vector<1x8x12xf32>,
    %8 = vector.extract_strided_slice %3 {offsets = [0, 12], sizes = [8, 12], strides = [1, 1]} : vector<8x36xf32> to vector<8x12xf32>
    %c0_7 = arith.constant 0 : index
    %c0_8 = arith.constant 0 : index
    %c0_9 = arith.constant 0 : index
    %9 = vector.load %arg5[%c0_7, %c0_8, %c0_9] : memref<1x8x12xf32, #tpu.memory_space<vmem>>, vector<1x8x12xf32>
    %10 = vector.shape_cast %9 : vector<1x8x12xf32> to vector<8x12xf32>
    %11 = vector.shape_cast %8 : vector<8x12xf32> to vector<1x8x12xf32>
    tpu.vector_store %arg5[%c0_7, %c0_8, %c0_9], %11 {strides = array<i32>} : memref<1x8x12xf32, #tpu.memory_space<vmem>>, vector<1x8x12xf32>,
    %12 = vector.extract_strided_slice %3 {offsets = [0, 24], sizes = [8, 12], strides = [1, 1]} : vector<8x36xf32> to vector<8x12xf32>
    %c0_10 = arith.constant 0 : index
    %c0_11 = arith.constant 0 : index
    %c0_12 = arith.constant 0 : index
    %13 = vector.load %arg6[%c0_10, %c0_11, %c0_12] : memref<1x8x12xf32, #tpu.memory_space<vmem>>, vector<1x8x12xf32>
    %14 = vector.shape_cast %13 : vector<1x8x12xf32> to vector<8x12xf32>
    %15 = vector.shape_cast %12 : vector<8x12xf32> to vector<1x8x12xf32>
    tpu.vector_store %arg6[%c0_10, %c0_11, %c0_12], %15 {strides = array<i32>} : memref<1x8x12xf32, #tpu.memory_space<vmem>>, vector<1x8x12xf32>,
    return
  }
  func.func @transform_0(%arg0: i32, %arg1: i32) -> (i32, i32, i32) {
    %c0_i32 = arith.constant 0 : i32
    %c0_i32_0 = arith.constant 0 : i32
    return %arg0, %arg1, %c0_i32 : i32, i32, i32
  }
  func.func @transform_1(%arg0: i32, %arg1: i32) -> (i32, i32) {
    %c0_i32 = arith.constant 0 : i32
    %c0_i32_0 = arith.constant 0 : i32
    %c0_i32_1 = arith.constant 0 : i32
    return %c0_i32, %c0_i32_0 : i32, i32
  }
  func.func @transform_2(%arg0: i32, %arg1: i32) -> (i32, i32, i32) {
    %c0_i32 = arith.constant 0 : i32
    %c0_i32_0 = arith.constant 0 : i32
    return %arg0, %arg1, %c0_i32 : i32, i32, i32
  }
  func.func @transform_3(%arg0: i32, %arg1: i32) -> (i32, i32, i32) {
    %c0_i32 = arith.constant 0 : i32
    %c0_i32_0 = arith.constant 0 : i32
    return %arg0, %arg1, %c0_i32 : i32, i32, i32
  }
  func.func @transform_4(%arg0: i32, %arg1: i32) -> (i32, i32, i32) {
    %c0_i32 = arith.constant 0 : i32
    %c0_i32_0 = arith.constant 0 : i32
    return %arg0, %arg1, %c0_i32 : i32, i32, i32
  }
}

</mosaic_0001>

<llo_original>
// kernel: tpu_custom_call.1
$region0: #{tpu_custom_call.1}
  #allocation0 [shape = 'u32[]', space=smem, size = 0x4, offset = 0x4, fixed_abs, tag = 'smem constant byte address 0x4 - core index']
  #allocation1 [shape = 'u32[72,128]{1,0:T(1,128)}', space=vmem, size = 0x9000, scoped, tag = 'internal scratch']
  %s0 = inlined_call_operand.vmem [shape: f32[2,8,4], index: 0, kind: input, shape index: {}]
  %s1 = inlined_call_operand.vmem [shape: f32[4,36], index: 1, kind: input, shape index: {}]
  %s2 = inlined_call_operand.hbm [shape: f32[2,8,12], index: 2, kind: output, shape index: {0}]
  %s3 = inlined_call_operand.hbm [shape: f32[2,8,12], index: 3, kind: output, shape index: {1}]
  %s4 = inlined_call_operand.hbm [shape: f32[2,8,12], index: 4, kind: output, shape index: {2}]
  %5 = xla_tuple %s2, %s3, %s4
  %s6 = sld [smem:[#allocation0]]
  $region57: #{tpu_custom_call.1} parent=0
    _
  %s8 = ssub.s32 1, %s6
  %s9 = scalar_select 0, %s8, %s6
  $region1: #{tpu_custom_call.1} parent=0
    #allocation2 [shape = 'u8[8192]{0}', space=vmem, size = 0x2000, scoped, tag = 'output window, operand 0']
    #allocation3 [shape = 's32[2]{0}', space=sflag, size = 0x8, scoped, tag = 'scoped memory for tpu_custom_call.1']
    #allocation4 [shape = 'u8[8192]{0}', space=vmem, size = 0x2000, scoped, tag = 'output window, operand 1']
    #allocation5 [shape = 's32[2]{0}', space=sflag, size = 0x8, scoped, tag = 'scoped memory for tpu_custom_call.1']
    #allocation6 [shape = 'u8[8192]{0}', space=vmem, size = 0x2000, scoped, tag = 'output window, operand 2']
    %10 = vsyncpa [#allocation3], 0
    %s11 = scalar_lea.sflag [#allocation3], 1
    %12 = vsyncpa %s11, 0
    %13 = vsyncpa [#allocation5], 0
    %s14 = scalar_lea.sflag [#allocation5], 1
    %15 = vsyncpa %s14, 0
    loop: start=0, step=1, limit=4
    $region2: #{tpu_custom_call.1} parent=1 // loop_pre_header
      _
    $region3: #{tpu_custom_call.1} parent=1 // loop_header
      %s17 = sphi 0, %s21
      %p18 = scmp.ge.s32.totalorder %s17, 4
      %s24 = sphi 0, %s36
      %s25 = sphi 0, %s32
      %s26 = sphi 0, %s24
      %s27 = sphi 0, %s25
      %s28 = sphi 0, %s26
      %s29 = sphi 0, %s27
      %s41 = sphi 0, %s43
      %s44 = sphi 0, %s41
      %s45 = sphi 0, %s44
      %s61 = sphi 0, %s45
      %s65 = sphi 0, %s65
      %s67 = sphi 0, %s65
      %s68 = sphi 0, %s67
      %s82 = sphi 0, %s68
      %s90 = sphi 0, %s92
      %s93 = sphi 0, %s90
      %s94 = sphi 0, %s93
      %s110 = sphi 0, %s94
      %s118 = sphi 0, %s120
      %s121 = sphi 0, %s118
      %s122 = sphi 0, %s121
      %s138 = sphi 0, %s122
      %s146 = sphi 0, %s148
      %s149 = sphi 0, %s146
      %s150 = sphi 0, %s149
      %s166 = sphi 0, %s150
    $region4: #{tpu_custom_call.1} parent=1 // loop_header_branch
      %20 = sbr.rel (%p18) target = $region8
    $region5: #{tpu_custom_call.1} parent=1 // loop_body
      %s22 = ssub.s32 %s17, 1
      %s23 = ssub.s32 %s17, 2
      %s30 = sadd.s32 1, %s25
      %p31 = scmp.ge.s32.totalorder %s30, 1
      %s32 = scalar_select %p31, 0, %s30
      %s33 = sadd.s32 1, %s24
      %s34 = scalar_select %p31, %s33, %s24
      %p35 = scmp.ge.s32.totalorder %s34, 2
      %s36 = scalar_select %p35, 0, %s34
      %s37 = ssub.s32 %s24, %s36
      %s38 = ssub.s32 %s25, %s32
      %s39 = sor.u32 %s37, %s38
      %p40 = scmp.eq.s32.totalorder %s39, 0
      %s42 = sadd.s32 %s41, 1
      %s43 = scalar_select %p40, %s41, %s42
      %p46 = pneg %p40
      %p47 = scmp.eq.s32.totalorder %s17, 1
      %p48 = por %p46, %p47
      %p49 = scmp.ne.s32.totalorder %s41, %s44
      %p50 = scmp.eq.s32.totalorder %s17, 0
      %p51 = por %p49, %p50
      %p52 = scmp.ne.s32.totalorder %s41, %s44
      %p53 = scmp.eq.s32.totalorder %s22, 1
      %p54 = por %p52, %p53
      %p55 = scmp.ne.s32.totalorder %s44, %s45
      %p56 = scmp.eq.s32.totalorder %s22, 0
      %p57 = por %p55, %p56
      %p58 = scmp.ne.s32.totalorder %s44, %s45
      %p59 = scmp.eq.s32.totalorder %s23, 1
      %p60 = por %p58, %p59
      %p62 = scmp.ne.s32.totalorder %s45, %s61
      %p63 = scmp.eq.s32.totalorder %s23, 0
      %p64 = por %p62, %p63
      %s66 = sadd.s32 %s65, 1
      %p69 = scmp.eq.s32.totalorder %s17, 1
      %p70 = scmp.ne.s32.totalorder %s65, %s67
      %p71 = scmp.eq.s32.totalorder %s17, 0
      %p72 = por %p70, %p71
      %p73 = scmp.ne.s32.totalorder %s65, %s67
      %p74 = scmp.eq.s32.totalorder %s22, 1
      %p75 = por %p73, %p74
      %p76 = scmp.ne.s32.totalorder %s67, %s68
      %p77 = scmp.eq.s32.totalorder %s22, 0
      %p78 = por %p76, %p77
      %p79 = scmp.ne.s32.totalorder %s67, %s68
      %p80 = scmp.eq.s32.totalorder %s23, 1
      %p81 = por %p79, %p80
      %p83 = scmp.ne.s32.totalorder %s68, %s82
      %p84 = scmp.eq.s32.totalorder %s23, 0
      %p85 = por %p83, %p84
      %s86 = ssub.s32 %s24, %s36
      %s87 = ssub.s32 %s25, %s32
      %s88 = sor.u32 %s86, %s87
      %p89 = scmp.eq.s32.totalorder %s88, 0
      %s91 = sadd.s32 %s90, 1
      %s92 = scalar_select %p89, %s90, %s91
      %p95 = pneg %p89
      %p96 = scmp.eq.s32.totalorder %s17, 1
      %p97 = por %p95, %p96
      %p98 = scmp.ne.s32.totalorder %s90, %s93
      %p99 = scmp.eq.s32.totalorder %s17, 0
      %p100 = por %p98, %p99
      %p101 = scmp.ne.s32.totalorder %s90, %s93
      %p102 = scmp.eq.s32.totalorder %s22, 1
      %p103 = por %p101, %p102
      %p104 = scmp.ne.s32.totalorder %s93, %s94
      %p105 = scmp.eq.s32.totalorder %s22, 0
      %p106 = por %p104, %p105
      %p107 = scmp.ne.s32.totalorder %s93, %s94
      %p108 = scmp.eq.s32.totalorder %s23, 1
      %p109 = por %p107, %p108
      %p111 = scmp.ne.s32.totalorder %s94, %s110
      %p112 = scmp.eq.s32.totalorder %s23, 0
      %p113 = por %p111, %p112
      %s114 = ssub.s32 %s24, %s36
      %s115 = ssub.s32 %s25, %s32
      %s116 = sor.u32 %s114, %s115
      %p117 = scmp.eq.s32.totalorder %s116, 0
      %s119 = sadd.s32 %s118, 1
      %s120 = scalar_select %p117, %s118, %s119
      %p123 = pneg %p117
      %p124 = scmp.eq.s32.totalorder %s17, 1
      %p125 = por %p123, %p124
      %p126 = scmp.ne.s32.totalorder %s118, %s121
      %p127 = scmp.eq.s32.totalorder %s17, 0
      %p128 = por %p126, %p127
      %p129 = scmp.ne.s32.totalorder %s118, %s121
      %p130 = scmp.eq.s32.totalorder %s22, 1
      %p131 = por %p129, %p130
      %p132 = scmp.ne.s32.totalorder %s121, %s122
      %p133 = scmp.eq.s32.totalorder %s22, 0
      %p134 = por %p132, %p133
      %p135 = scmp.ne.s32.totalorder %s121, %s122
      %p136 = scmp.eq.s32.totalorder %s23, 1
      %p137 = por %p135, %p136
      %p139 = scmp.ne.s32.totalorder %s122, %s138
      %p140 = scmp.eq.s32.totalorder %s23, 0
      %p141 = por %p139, %p140
      %s142 = ssub.s32 %s24, %s36
      %s143 = ssub.s32 %s25, %s32
      %s144 = sor.u32 %s142, %s143
      %p145 = scmp.eq.s32.totalorder %s144, 0
      %s147 = sadd.s32 %s146, 1
      %s148 = scalar_select %p145, %s146, %s147
      %p151 = pneg %p145
      %p152 = scmp.eq.s32.totalorder %s17, 1
      %p153 = por %p151, %p152
      %p154 = scmp.ne.s32.totalorder %s146, %s149
      %p155 = scmp.eq.s32.totalorder %s17, 0
      %p156 = por %p154, %p155
      %p157 = scmp.ne.s32.totalorder %s146, %s149
      %p158 = scmp.eq.s32.totalorder %s22, 1
      %p159 = por %p157, %p158
      %p160 = scmp.ne.s32.totalorder %s149, %s150
      %p161 = scmp.eq.s32.totalorder %s22, 0
      %p162 = por %p160, %p161
      %p163 = scmp.ne.s32.totalorder %s149, %s150
      %p164 = scmp.eq.s32.totalorder %s23, 1
      %p165 = por %p163, %p164
      %p167 = scmp.ne.s32.totalorder %s150, %s166
      %p168 = scmp.eq.s32.totalorder %s23, 0
      %p169 = por %p167, %p168
      %p170 = scmp.le.s32.totalorder 1, %s17
      %p171 = scmp.lt.s32.totalorder %s17, 3
      %p172 = pnand %p170, %p171
      %p173 = pneg %p172
      // Predicated region
      $region9: #{tpu_custom_call.1} parent=5 // pred_check
        _
      $region10: #{tpu_custom_call.1} parent=5 // pred_check_branch
        %175 = sbr.rel (%p172) target = $region12
      $region11: #{tpu_custom_call.1} parent=5 // pred_region
        %s176 = ssub.s32 %s17, 1
        // Predicated region
        $region13: #{tpu_custom_call.1} parent=11 // pred_check
          %p177 = pneg %p78
        $region14: #{tpu_custom_call.1} parent=11 // pred_check_branch
          %179 = sbr.rel (%p177) target = $region16
        $region15: #{tpu_custom_call.1} parent=11 // pred_region
          _
        $region16: #{tpu_custom_call.1} parent=11 // pred_fallthru
          _
      $region12: #{tpu_custom_call.1} parent=5 // pred_fallthru
        _
      %p180 = scmp.lt.s32.totalorder %s17, 2
      // Predicated region
      $region17: #{tpu_custom_call.1} parent=5 // pred_check
        %p181 = pneg %p180
      $region18: #{tpu_custom_call.1} parent=5 // pred_check_branch
        %183 = sbr.rel (%p181) target = $region20
      $region19: #{tpu_custom_call.1} parent=5 // pred_region
        // Predicated region
        $region21: #{tpu_custom_call.1} parent=19 // pred_check
          %p184 = pneg %p51
        $region22: #{tpu_custom_call.1} parent=19 // pred_check_branch
          %186 = sbr.rel (%p184) target = $region24
        $region23: #{tpu_custom_call.1} parent=19 // pred_region
          %p187 = scmp.lt.s32.totalorder %s24, 1
          %s188 = scalar_select %p187, %s24, 1
          %p189 = scmp.lt.s32.totalorder %s25, 0
          %s190 = scalar_select %p189, %s25, 0
          %s191 = sadd.s32 %s190, %s188
          %s192 = smul.addr %s191, 8
          %s193 = scalar_lea.vmem %s0, %s192
        $region24: #{tpu_custom_call.1} parent=19 // pred_fallthru
          _
      $region20: #{tpu_custom_call.1} parent=5 // pred_fallthru
        _
      %p194 = scmp.le.s32.totalorder 1, %s17
      %p195 = scmp.lt.s32.totalorder %s17, 3
      %p196 = pnand %p194, %p195
      %p197 = pneg %p196
      // Predicated region
      $region25: #{tpu_custom_call.1} parent=5 // pred_check
        _
      $region26: #{tpu_custom_call.1} parent=5 // pred_check_branch
        %199 = sbr.rel (%p196) target = $region28
      $region27: #{tpu_custom_call.1} parent=5 // pred_region
        %s200 = ssub.s32 %s17, 1
        %p201 = scmp.lt.s32.totalorder %s26, 1
        %s202 = scalar_select %p201, %s26, 1
        %p203 = scmp.lt.s32.totalorder %s27, 0
        %s204 = scalar_select %p203, %s27, 0
        %s205 = sadd.s32 %s204, %s202
        %s206 = smul.addr %s205, 8
        %s207 = scalar_lea.vmem %s0, %s206
        %p208 = pneg %p57
        %p209 = pneg %p54
        %p210 = pneg %p78
        %p211 = pneg %p75
        %p212 = pneg %p106
        %p213 = pneg %p103
        %s214 = sand.u32 %s93, 1
        %s215 = scalar_lea.sflag [#allocation3], %s214
        %s216 = sand.u32 %s93, 1
        %s217 = smul.addr %s216, 8
        %s218 = scalar_lea.vmem [#allocation2], %s217
        %p219 = pneg %p134
        %p220 = pneg %p131
        %s221 = sand.u32 %s22, 1
        %s222 = scalar_lea.sflag [#allocation5], %s221
        %s223 = sand.u32 %s121, 1
        %s224 = smul.addr %s223, 8
        %s225 = scalar_lea.vmem [#allocation4], %s224
        %p226 = pneg %p162
        %p227 = pneg %p159
        %s228 = sand.u32 %s22, 1
        %s229 = scalar_lea.sflag [#allocation5], %s228
        %s230 = sand.u32 %s149, 1
        %s231 = smul.addr %s230, 8
        %s232 = scalar_lea.vmem [#allocation6], %s231
        %p233 = scmp.lt.s32.totalorder %s26, 1
        %s234 = scalar_select %p233, %s26, 1
        %p235 = scmp.lt.s32.totalorder %s27, 0
        %s236 = scalar_select %p235, %s27, 0
        %s237 = sadd.s32 %s236, %s234
        %s238 = smul.addr %s237, 8
        %s239 = scalar_lea.vmem %s0, %s238
        %v240 = vld [vmem:[%s239] sm:$0xff]
        %v241 = vld [vmem:[%s1] sm:$0xf]
        %vm242 = vcmask 31744
        %v244 = vsel %vm242, %v240, 0
        %vm246 = vcmask 1043456
        %v248 = vsel %vm246, %v241, 0
        %250 = vmatpush.msra.mxu0 0.0
        %251 = vmatpush.msra.mxu0 0.0
        %252 = vmatpush.msra.mxu0 0.0
        %253 = vmatpush.msra.mxu0 0.0
        %254 = vmatpush.msra.mxu0 0.0
        %255 = vmatpush.msra.mxu0 0.0
        %256 = vmatpush.msra.mxu0 0.0
        %257 = vmatpush.msra.mxu0 0.0
        %258 = vmatpush.msra.mxu0 0.0
        %259 = vmatpush.msra.mxu0 0.0
        %260 = vmatpush.msra.mxu0 0.0
        %261 = vmatpush.msra.mxu0 0.0
        %262 = vmatpush.msra.mxu0 0.0
        %263 = vmatpush.msra.mxu0 0.0
        %264 = vmatpush.msra.mxu0 0.0
        %265 = vmatpush.msra.mxu0 %v248
        %266 = vmatmul.f32.gmra.mxu0 %v244
        %v267 = vpop.f32.mrf.mxu0
        %v268 = vadd.f32 0.0, %v267
        %269 = vdwg.mxu0
        %vm270 = vcmask 97280
        %271 = vst.msk [vmem:[%s218] sm:$0xff] %vm270, %v268
        %273 = vrot.lane.b32.xlu0 %v268, 116
        %v274 = vpop.permute.xlu0 %273
        %276 = vst.msk [vmem:[%s225] sm:$0xff] %vm270, %v274
        %277 = vrot.lane.b32.xlu0 %v268, 104
        %v278 = vpop.permute.xlu0 %277
        %280 = vst.msk [vmem:[%s232] sm:$0xff] %vm270, %v278
        %s281 = sand.u32 %s93, 1
        %s282 = scalar_lea.sflag [#allocation3], %s281
        %s283 = sand.u32 %s93, 1
        %s284 = smul.addr %s283, 8
        %s285 = scalar_lea.vmem [#allocation2], %s284
        %s286 = sand.u32 %s22, 1
        %s287 = scalar_lea.sflag [#allocation5], %s286
        %s288 = sand.u32 %s121, 1
        %s289 = smul.addr %s288, 8
        %s290 = scalar_lea.vmem [#allocation4], %s289
        %s291 = sand.u32 %s22, 1
        %s292 = scalar_lea.sflag [#allocation5], %s291
        %s293 = sand.u32 %s149, 1
        %s294 = smul.addr %s293, 8
        %s295 = scalar_lea.vmem [#allocation6], %s294
        // Predicated region
        $region29: #{tpu_custom_call.1} parent=27 // pred_check
          %p296 = pneg %p103
        $region30: #{tpu_custom_call.1} parent=27 // pred_check_branch
          %298 = sbr.rel (%p296) target = $region32
        $region31: #{tpu_custom_call.1} parent=27 // pred_region
          %300 = vsyncadd %s282, 0
          %s301 = sadd.s32 %s27, %s26
          %s302 = smul.addr %s301, 8
          %s303 = scalar_lea.hbm %s2, %s302
          %s305 = sshll.u32 %s285, 4
          %s306 = int_to_ptr.vmem [resolvable:$true] %s305
          %s307 = sshll.u32 %s303, 4
          %s308 = int_to_ptr.hbm [resolvable:$true] %s307
          %310 = dma.vmem_to_hbm [thread:$0]  %s306, 128, %s308, %s282
        $region32: #{tpu_custom_call.1} parent=27 // pred_fallthru
          _
        // Predicated region
        $region33: #{tpu_custom_call.1} parent=27 // pred_check
          %p311 = pneg %p131
        $region34: #{tpu_custom_call.1} parent=27 // pred_check_branch
          %313 = sbr.rel (%p311) target = $region36
        $region35: #{tpu_custom_call.1} parent=27 // pred_region
          %315 = vsyncadd %s287, 0
          %s316 = sadd.s32 %s27, %s26
          %s317 = smul.addr %s316, 8
          %s318 = scalar_lea.hbm %s3, %s317
          %s320 = sshll.u32 %s290, 4
          %s321 = int_to_ptr.vmem [resolvable:$true] %s320
          %s322 = sshll.u32 %s318, 4
          %s323 = int_to_ptr.hbm [resolvable:$true] %s322
          %325 = dma.vmem_to_hbm [thread:$0]  %s321, 128, %s323, %s287
        $region36: #{tpu_custom_call.1} parent=27 // pred_fallthru
          _
        // Predicated region
        $region37: #{tpu_custom_call.1} parent=27 // pred_check
          %p326 = pneg %p159
        $region38: #{tpu_custom_call.1} parent=27 // pred_check_branch
          %328 = sbr.rel (%p326) target = $region40
        $region39: #{tpu_custom_call.1} parent=27 // pred_region
          %330 = vsyncadd %s292, 0
          %s331 = sadd.s32 %s27, %s26
          %s332 = smul.addr %s331, 8
          %s333 = scalar_lea.hbm %s4, %s332
          %s335 = sshll.u32 %s295, 4
          %s336 = int_to_ptr.vmem [resolvable:$true] %s335
          %s337 = sshll.u32 %s333, 4
          %s338 = int_to_ptr.hbm [resolvable:$true] %s337
          %340 = dma.vmem_to_hbm [thread:$0]  %s336, 128, %s338, %s292
        $region40: #{tpu_custom_call.1} parent=27 // pred_fallthru
          _
      $region28: #{tpu_custom_call.1} parent=5 // pred_fallthru
        _
      %p341 = scmp.le.s32.totalorder 2, %s17
      // Predicated region
      $region41: #{tpu_custom_call.1} parent=5 // pred_check
        %p342 = pneg %p341
      $region42: #{tpu_custom_call.1} parent=5 // pred_check_branch
        %344 = sbr.rel (%p342) target = $region44
      $region43: #{tpu_custom_call.1} parent=5 // pred_region
        %s345 = ssub.s32 %s17, 2
        // Predicated region
        $region45: #{tpu_custom_call.1} parent=43 // pred_check
          %p346 = pneg %p109
        $region46: #{tpu_custom_call.1} parent=43 // pred_check_branch
          %348 = sbr.rel (%p346) target = $region48
        $region47: #{tpu_custom_call.1} parent=43 // pred_region
          %s349 = sand.u32 %s94, 1
          %s350 = scalar_lea.sflag [#allocation3], %s349
          %s351 = sand.u32 %s94, 1
          %s352 = smul.addr %s351, 8
          %s353 = scalar_lea.vmem [#allocation2], %s352
          %355 = dma.done %s350, 128
        $region48: #{tpu_custom_call.1} parent=43 // pred_fallthru
          _
        // Predicated region
        $region49: #{tpu_custom_call.1} parent=43 // pred_check
          %p356 = pneg %p137
        $region50: #{tpu_custom_call.1} parent=43 // pred_check_branch
          %358 = sbr.rel (%p356) target = $region52
        $region51: #{tpu_custom_call.1} parent=43 // pred_region
          %s359 = sand.u32 %s23, 1
          %s360 = scalar_lea.sflag [#allocation5], %s359
          %s361 = sand.u32 %s122, 1
          %s362 = smul.addr %s361, 8
          %s363 = scalar_lea.vmem [#allocation4], %s362
          %365 = dma.done %s360, 128
        $region52: #{tpu_custom_call.1} parent=43 // pred_fallthru
          _
        // Predicated region
        $region53: #{tpu_custom_call.1} parent=43 // pred_check
          %p366 = pneg %p165
        $region54: #{tpu_custom_call.1} parent=43 // pred_check_branch
          %368 = sbr.rel (%p366) target = $region56
        $region55: #{tpu_custom_call.1} parent=43 // pred_region
          %s369 = sand.u32 %s23, 1
          %s370 = scalar_lea.sflag [#allocation5], %s369
          %s371 = sand.u32 %s150, 1
          %s372 = smul.addr %s371, 8
          %s373 = scalar_lea.vmem [#allocation6], %s372
          %375 = dma.done %s370, 128
        $region56: #{tpu_custom_call.1} parent=43 // pred_fallthru
          _
      $region44: #{tpu_custom_call.1} parent=5 // pred_fallthru
        _
    $region6: #{tpu_custom_call.1} parent=1 // loop_footer
      %s21 = sadd.s32 1, %s17
    $region7: #{tpu_custom_call.1} parent=1 // loop_footer_branch
      %16 = sbr.rel target = $region3
    $region8: #{tpu_custom_call.1} parent=1 // loop_exit
      _
    %376 = vsyncpa [#allocation3], 1
    %s377 = scalar_lea.sflag [#allocation3], 1
    %378 = vsyncpa %s377, 1
    %379 = vsyncpa [#allocation5], 1
    %s380 = scalar_lea.sflag [#allocation5], 1
    %381 = vsyncpa %s380, 1

</llo_original>
